<compile_context>
chip_gen: v5e
topology: v5e:2x2
jax: 0.10.0
libtpu: 0.0.40
codegen_flags: <defaults>
</compile_context>

<pallas_src>
import functools

import jax
import jax.numpy as jnp
from jax.experimental import pallas as pl
from jax.experimental.pallas import tpu as pltpu


def _linear_classifier_kernel(x_ref, w_ref, b_ref, o_ref, acc_ref, *,
                              true_l, lc, group, inv_l):
    # x_ref : [b_tile, 2H, lc]   native layout, L chunk on the 128-lane axis
    # w_ref : [2H, Tp]           resident across the grid
    # b_ref : [1, Tp]            resident (f32, padded lanes = -1e30)
    # o_ref : [1, b_tile, Tp]    resident across the L (reduction) axis
    # acc_ref: VMEM [b_tile, 2H, group] f32 lane-group partial sums
    li = pl.program_id(1)
    last = pl.num_programs(1) - 1

    @pl.when(li == 0)
    def _init():
        acc_ref[...] = jnp.zeros_like(acc_ref)

    def _accumulate(xv):
        # Elementwise VPU adds over static, lane-aligned 128-wide slices.
        part = xv[:, :, 0:group]
        for k in range(1, lc // group):
            part = part + xv[:, :, k * group:(k + 1) * group]
        acc_ref[...] += part

    needs_mask = (pl.cdiv(true_l, lc) * lc) != true_l
    if needs_mask:
        @pl.when(li != last)
        def _full_chunk():
            _accumulate(x_ref[...].astype(jnp.float32))

        @pl.when(li == last)
        def _tail_chunk():
            # Only the ragged tail chunk pays for the mask.
            xv = x_ref[...].astype(jnp.float32)
            lane = jax.lax.broadcasted_iota(jnp.int32, xv.shape, 2)
            xv = jnp.where(lane < (true_l - li * lc), xv, 0.0)
            _accumulate(xv)
    else:
        _accumulate(x_ref[...].astype(jnp.float32))

    @pl.when(li == last)
    def _finalize():
        # Single cross-lane reduce over the lane-group accumulator.
        hidden = jnp.sum(acc_ref[...], axis=2) * inv_l          # [b_tile, 2H]
        logits = jnp.dot(hidden, w_ref[...].astype(jnp.float32),
                         preferred_element_type=jnp.float32)     # [b_tile, Tp]
        logits = logits + b_ref[...]                              # f32 bias
        m = jnp.max(logits, axis=1, keepdims=True)
        shifted = logits - m
        lse = jnp.log(jnp.sum(jnp.exp(shifted), axis=1, keepdims=True))
        o_ref[...] = (shifted - lse)[None].astype(o_ref.dtype)


def linear_classifier(x, w, b):
    """x: [B, 2H, L], w: [2H, T], b: [T] -> log-probs [B, T] (float32)."""
    B, twoH, L = x.shape
    T = w.shape[1]

    # ---- small parameter prep (x itself is passed through untouched) ----
    t_pad = pl.cdiv(T, 128) * 128
    w_p = jnp.pad(w, ((0, 0), (0, t_pad - T)))                  # zero columns
    b_p = jnp.pad(b.astype(jnp.float32), (0, t_pad - T),
                  constant_values=-1e30).reshape(1, t_pad)      # f32 pad value

    # ---- B tiling: >=2 tiles whenever B >= 2 so both v7x cores get work ----
    if B >= 128:
        b_tile = 64
    else:
        b_tile = max(1, pl.cdiv(B, 2))
    num_b_tiles = pl.cdiv(B, b_tile)

    # ---- L chunking from a VMEM budget (x stream is double-buffered) ----
    x_elt = x.dtype.itemsize
    vmem_budget = 36 * 1024 * 1024        # conservative across v5e/v6e/v7x
    resident = (twoH * t_pad * w_p.dtype.itemsize      # W block
                + t_pad * 4                            # bias block
                + 2 * b_tile * t_pad * 4               # output block (x2)
                + b_tile * twoH * 128 * 4)             # accumulator scratch
    avail = max(vmem_budget - resident, 2 * b_tile * twoH * 128 * x_elt)
    lc_budget = max(128, (avail // (2 * b_tile * twoH * x_elt)) // 128 * 128)

    if L <= 128:
        lc = L                                  # full dim: legal lane block
    else:
        lc = min(lc_budget, pl.cdiv(L, 128) * 128)
    group = min(lc, 128)
    num_l_chunks = pl.cdiv(L, lc)

    grid = (num_b_tiles, num_l_chunks)

    kernel = functools.partial(
        _linear_classifier_kernel,
        true_l=L, lc=lc, group=group, inv_l=1.0 / L)

    total_vmem = resident + 2 * b_tile * twoH * lc * x_elt
    vmem_limit = int(max(total_vmem + (8 << 20), 32 << 20))

    # Advisory cost: this kernel is an HBM stream of x, not an MXU problem.
    cost = pl.CostEstimate(
        flops=B * twoH * L + 2 * B * twoH * T + 5 * B * T,
        transcendentals=B * T,
        bytes_accessed=(x.size * x_elt + w.size * w.dtype.itemsize
                        + b.size * 4 + B * T * 4),
    )

    out = pl.pallas_call(
        kernel,
        out_shape=jax.ShapeDtypeStruct((num_b_tiles, b_tile, t_pad),
                                       jnp.float32),
        grid_spec=pltpu.PrefetchScalarGridSpec(
            num_scalar_prefetch=0,
            grid=grid,
            in_specs=[
                pl.BlockSpec((b_tile, twoH, lc), lambda bi, li: (bi, 0, li)),
                pl.BlockSpec((twoH, t_pad), lambda bi, li: (0, 0)),
                pl.BlockSpec((1, t_pad), lambda bi, li: (0, 0)),
            ],
            out_specs=pl.BlockSpec((1, b_tile, t_pad),
                                   lambda bi, li: (bi, 0, 0)),
            scratch_shapes=[pltpu.VMEM((b_tile, twoH, group), jnp.float32)],
        ),
        compiler_params=pltpu.CompilerParams(
            dimension_semantics=("parallel", "arbitrary"),
            vmem_limit_bytes=vmem_limit),
        cost_estimate=cost,
    )(x, w_p, b_p)

    return out.reshape(num_b_tiles * b_tile, t_pad)[:B, :T]


def reference(x, w, b):
    hidden = jnp.mean(x, axis=2)
    logits = hidden @ w + b
    return jax.nn.log_softmax(logits, axis=1)


if __name__ == "__main__":
    key = jax.random.PRNGKey(0)
    hidden_dim = 16          # in_features = 2 * hidden_dim = 32
    tagset_size = 10
    B, L = 2, 8

    kx, kw, kb = jax.random.split(key, 3)
    x = jax.random.normal(kx, (B, 2 * hidden_dim, L), dtype=jnp.float32)

    # nn.Linear default init: U(-1/sqrt(in_features), 1/sqrt(in_features));
    # stored as [in_features, out_features] (transpose of PyTorch's [out, in]).
    bound = 1.0 / jnp.sqrt(jnp.float32(2 * hidden_dim))
    w = jax.random.uniform(kw, (2 * hidden_dim, tagset_size),
                           minval=-bound, maxval=bound, dtype=jnp.float32)
    b = jax.random.uniform(kb, (tagset_size,),
                           minval=-bound, maxval=bound, dtype=jnp.float32)

    out = linear_classifier(x, w, b)
    out = jax.block_until_ready(out)

    ref = reference(x, w, b)
    assert out.shape == (B, tagset_size)
    assert jnp.allclose(out, ref, atol=1e-5, rtol=1e-5), "mismatch vs reference"

    print("KERNEL_OK")
</pallas_src>

<mosaic_0001>
module attributes {stable_mosaic.version = 11 : i64} {
  func.func @_linear_classifier_kernel(%arg0: i32, %arg1: i32, %arg2: memref<1x32x8xf32, #tpu.memory_space<vmem>>, %arg3: memref<32x128xf32, #tpu.memory_space<vmem>>, %arg4: memref<1x128xf32, #tpu.memory_space<vmem>>, %arg5: memref<1x1x128xf32, #tpu.memory_space<vmem>>, %arg6: memref<1x32x8xf32, #tpu.memory_space<vmem>>) attributes {dimension_semantics = [#tpu.dimension_semantics<parallel>, #tpu.dimension_semantics<arbitrary>], iteration_bounds = array<i64: 2, 1>, scalar_prefetch = 0 : i64, scratch_operands = 1 : i64, tpu.core_type = #tpu.core_type<tc>, window_params = [{transform_indices = @transform_0, window_bounds = array<i64: 1, 32, 8>}, {pipeline_mode = #tpu.pipeline_mode<synchronous>, transform_indices = @transform_1, window_bounds = array<i64: 32, 128>}, {pipeline_mode = #tpu.pipeline_mode<synchronous>, transform_indices = @transform_2, window_bounds = array<i64: 1, 128>}, {transform_indices = @transform_3, window_bounds = array<i64: 1, 1, 128>}]} {
    %c0_i32 = arith.constant 0 : i32
    %0 = arith.cmpi eq, %arg1, %c0_i32 : i32
    %1 = arith.extui %0 : i1 to i32
    %c0_i32_0 = arith.constant 0 : i32
    %2 = arith.cmpi ne, %1, %c0_i32_0 : i32
    scf.if %2 {
      %cst = arith.constant 0.000000e+00 : f32
      %10 = vector.broadcast %cst : f32 to vector<1x32x8xf32>
      %c0_11 = arith.constant 0 : index
      %c0_12 = arith.constant 0 : index
      %c0_13 = arith.constant 0 : index
      %11 = vector.load %arg6[%c0_11, %c0_12, %c0_13] : memref<1x32x8xf32, #tpu.memory_space<vmem>>, vector<1x32x8xf32>
      tpu.vector_store %arg6[%c0_11, %c0_12, %c0_13], %10 {strides = array<i32>} : memref<1x32x8xf32, #tpu.memory_space<vmem>>, vector<1x32x8xf32>,
    } else {
    }
    %c0 = arith.constant 0 : index
    %c0_1 = arith.constant 0 : index
    %c0_2 = arith.constant 0 : index
    %3 = vector.load %arg2[%c0, %c0_1, %c0_2] : memref<1x32x8xf32, #tpu.memory_space<vmem>>, vector<1x32x8xf32>
    %c0_3 = arith.constant 0 : index
    %c0_4 = arith.constant 0 : index
    %c0_5 = arith.constant 0 : index
    %4 = vector.load %arg6[%c0_3, %c0_4, %c0_5] : memref<1x32x8xf32, #tpu.memory_space<vmem>>, vector<1x32x8xf32>
    %5 = arith.addf %4, %3 : vector<1x32x8xf32>
    %c0_6 = arith.constant 0 : index
    %c0_7 = arith.constant 0 : index
    %c0_8 = arith.constant 0 : index
    %6 = vector.load %arg6[%c0_6, %c0_7, %c0_8] : memref<1x32x8xf32, #tpu.memory_space<vmem>>, vector<1x32x8xf32>
    tpu.vector_store %arg6[%c0_6, %c0_7, %c0_8], %5 {strides = array<i32>} : memref<1x32x8xf32, #tpu.memory_space<vmem>>, vector<1x32x8xf32>,
    %c0_i32_9 = arith.constant 0 : i32
    %7 = arith.cmpi eq, %arg1, %c0_i32_9 : i32
    %8 = arith.extui %7 : i1 to i32
    %c0_i32_10 = arith.constant 0 : i32
    %9 = arith.cmpi ne, %8, %c0_i32_10 : i32
    scf.if %9 {
      %c0_11 = arith.constant 0 : index
      %c0_12 = arith.constant 0 : index
      %c0_13 = arith.constant 0 : index
      %10 = vector.load %arg6[%c0_11, %c0_12, %c0_13] : memref<1x32x8xf32, #tpu.memory_space<vmem>>, vector<1x32x8xf32>
      %cst = arith.constant dense<0.000000e+00> : vector<1x32xf32>
      %11 = vector.multi_reduction <add>, %10, %cst [2] : vector<1x32x8xf32> to vector<1x32xf32>
      %cst_14 = arith.constant 1.250000e-01 : f32
      %12 = vector.broadcast %cst_14 : f32 to vector<1x32xf32>
      %13 = arith.mulf %11, %12 : vector<1x32xf32>
      %c0_15 = arith.constant 0 : index
      %c0_16 = arith.constant 0 : index
      %14 = vector.load %arg3[%c0_15, %c0_16] : memref<32x128xf32, #tpu.memory_space<vmem>>, vector<32x128xf32>
      %cst_17 = arith.constant dense<0.000000e+00> : vector<1x128xf32>
      %15 = tpu.matmul %13, %14, %cst_17 {dimension_numbers = #tpu.dot_dimension_numbers<[1], [0], [0], [1], [0, 0, 1, 1], [], []>} : vector<1x32xf32>, vector<32x128xf32>, vector<1x128xf32> -> vector<1x128xf32>
      %c0_18 = arith.constant 0 : index
      %c0_19 = arith.constant 0 : index
      %16 = vector.load %arg4[%c0_18, %c0_19] : memref<1x128xf32, #tpu.memory_space<vmem>>, vector<1x128xf32>
      %17 = arith.addf %15, %16 : vector<1x128xf32>
      %cst_20 = arith.constant dense<0xFF800000> : vector<1xf32>
      %18 = vector.multi_reduction <maximumf>, %17, %cst_20 [1] : vector<1x128xf32> to vector<1xf32>
      %19 = vector.shape_cast %18 : vector<1xf32> to vector<1x1xf32>
      %20 = vector.broadcast %19 : vector<1x1xf32> to vector<1x128xf32>
      %21 = arith.subf %17, %20 : vector<1x128xf32>
      %22 = math.exp %21 : vector<1x128xf32>
      %cst_21 = arith.constant dense<0.000000e+00> : vector<1xf32>
      %23 = vector.multi_reduction <add>, %22, %cst_21 [1] : vector<1x128xf32> to vector<1xf32>
      %24 = vector.shape_cast %23 : vector<1xf32> to vector<1x1xf32>
      %25 = math.log %24 : vector<1x1xf32>
      %26 = vector.broadcast %25 : vector<1x1xf32> to vector<1x128xf32>
      %27 = arith.subf %21, %26 : vector<1x128xf32>
      %28 = vector.shape_cast %27 : vector<1x128xf32> to vector<1x1x128xf32>
      %c0_22 = arith.constant 0 : index
      %c0_23 = arith.constant 0 : index
      %c0_24 = arith.constant 0 : index
      %29 = vector.load %arg5[%c0_22, %c0_23, %c0_24] : memref<1x1x128xf32, #tpu.memory_space<vmem>>, vector<1x1x128xf32>
      tpu.vector_store %arg5[%c0_22, %c0_23, %c0_24], %28 {strides = array<i32>} : memref<1x1x128xf32, #tpu.memory_space<vmem>>, vector<1x1x128xf32>,
    } else {
    }
    return
  }
  func.func @transform_0(%arg0: i32, %arg1: i32) -> (i32, i32, i32) {
    %c0_i32 = arith.constant 0 : i32
    %c0_i32_0 = arith.constant 0 : i32
    return %arg0, %c0_i32, %arg1 : i32, i32, i32
  }
  func.func @transform_1(%arg0: i32, %arg1: i32) -> (i32, i32) {
    %c0_i32 = arith.constant 0 : i32
    %c0_i32_0 = arith.constant 0 : i32
    %c0_i32_1 = arith.constant 0 : i32
    return %c0_i32, %c0_i32_0 : i32, i32
  }
  func.func @transform_2(%arg0: i32, %arg1: i32) -> (i32, i32) {
    %c0_i32 = arith.constant 0 : i32
    %c0_i32_0 = arith.constant 0 : i32
    %c0_i32_1 = arith.constant 0 : i32
    return %c0_i32, %c0_i32_0 : i32, i32
  }
  func.func @transform_3(%arg0: i32, %arg1: i32) -> (i32, i32, i32) {
    %c0_i32 = arith.constant 0 : i32
    %c0_i32_0 = arith.constant 0 : i32
    %c0_i32_1 = arith.constant 0 : i32
    return %arg0, %c0_i32, %c0_i32_0 : i32, i32, i32
  }
}

</mosaic_0001>

<llo_original>
// kernel: tpu_custom_call.1
$region0: #{tpu_custom_call.1}
  #allocation0 [shape = 'u32[]', space=smem, size = 0x4, offset = 0x4, fixed_abs, tag = 'smem constant byte address 0x4 - core index']
  #allocation1 [shape = 'u32[72,128]{1,0:T(1,128)}', space=vmem, size = 0x9000, scoped, tag = 'internal scratch']
  #allocation2 [shape = 'f32[1,32,8]{2,1,0:T(8,128)}', space=vmem, size = 0x4000, scoped, tag = 'scratch operand']
  %s0 = inlined_call_operand.vmem [shape: f32[2,32,8], index: 0, kind: input, shape index: {}]
  %s1 = inlined_call_operand.vmem [shape: f32[32,128], index: 1, kind: input, shape index: {}]
  %s2 = inlined_call_operand.vmem [shape: f32[1,128], index: 2, kind: input, shape index: {}]
  %s3 = inlined_call_operand.hbm [shape: f32[2,1,128], index: 3, kind: output, shape index: {}]
  %s4 = sld [smem:[#allocation0]]
  $region53: #{tpu_custom_call.1} parent=0
    _
  %s6 = ssub.s32 1, %s4
  %s7 = scalar_select 0, %s6, %s4
  $region1: #{tpu_custom_call.1} parent=0
    #allocation3 [shape = 'u8[1024]{0}', space=vmem, size = 0x400, scoped, tag = 'output window, operand 0']
    #allocation4 [shape = 's32[2]{0}', space=sflag, size = 0x8, scoped, tag = 'scoped memory for tpu_custom_call.1']
    %8 = vsyncpa [#allocation4], 0
    %s9 = scalar_lea.sflag [#allocation4], 1
    %10 = vsyncpa %s9, 0
    loop: start=0, step=1, limit=4
    $region2: #{tpu_custom_call.1} parent=1 // loop_pre_header
      _
    $region3: #{tpu_custom_call.1} parent=1 // loop_header
      %s12 = sphi 0, %s16
      %p13 = scmp.ge.s32.totalorder %s12, 4
      %s19 = sphi 0, %s31
      %s20 = sphi 0, %s27
      %s21 = sphi 0, %s19
      %s22 = sphi 0, %s20
      %s23 = sphi 0, %s21
      %s24 = sphi 0, %s22
      %s36 = sphi 0, %s38
      %s39 = sphi 0, %s36
      %s40 = sphi 0, %s39
      %s56 = sphi 0, %s40
      %s60 = sphi 0, %s60
      %s62 = sphi 0, %s60
      %s63 = sphi 0, %s62
      %s77 = sphi 0, %s63
      %s81 = sphi 0, %s81
      %s83 = sphi 0, %s81
      %s84 = sphi 0, %s83
      %s98 = sphi 0, %s84
      %s104 = sphi 0, %s106
      %s107 = sphi 0, %s104
      %s108 = sphi 0, %s107
      %s124 = sphi 0, %s108
    $region4: #{tpu_custom_call.1} parent=1 // loop_header_branch
      %15 = sbr.rel (%p13) target = $region8
    $region5: #{tpu_custom_call.1} parent=1 // loop_body
      %s17 = ssub.s32 %s12, 1
      %s18 = ssub.s32 %s12, 2
      %s25 = sadd.s32 1, %s20
      %p26 = scmp.ge.s32.totalorder %s25, 1
      %s27 = scalar_select %p26, 0, %s25
      %s28 = sadd.s32 1, %s19
      %s29 = scalar_select %p26, %s28, %s19
      %p30 = scmp.ge.s32.totalorder %s29, 2
      %s31 = scalar_select %p30, 0, %s29
      %s32 = ssub.s32 %s19, %s31
      %s33 = ssub.s32 %s20, %s27
      %s34 = sor.u32 %s32, %s33
      %p35 = scmp.eq.s32.totalorder %s34, 0
      %s37 = sadd.s32 %s36, 1
      %s38 = scalar_select %p35, %s36, %s37
      %p41 = pneg %p35
      %p42 = scmp.eq.s32.totalorder %s12, 1
      %p43 = por %p41, %p42
      %p44 = scmp.ne.s32.totalorder %s36, %s39
      %p45 = scmp.eq.s32.totalorder %s12, 0
      %p46 = por %p44, %p45
      %p47 = scmp.ne.s32.totalorder %s36, %s39
      %p48 = scmp.eq.s32.totalorder %s17, 1
      %p49 = por %p47, %p48
      %p50 = scmp.ne.s32.totalorder %s39, %s40
      %p51 = scmp.eq.s32.totalorder %s17, 0
      %p52 = por %p50, %p51
      %p53 = scmp.ne.s32.totalorder %s39, %s40
      %p54 = scmp.eq.s32.totalorder %s18, 1
      %p55 = por %p53, %p54
      %p57 = scmp.ne.s32.totalorder %s40, %s56
      %p58 = scmp.eq.s32.totalorder %s18, 0
      %p59 = por %p57, %p58
      %s61 = sadd.s32 %s60, 1
      %p64 = scmp.eq.s32.totalorder %s12, 1
      %p65 = scmp.ne.s32.totalorder %s60, %s62
      %p66 = scmp.eq.s32.totalorder %s12, 0
      %p67 = por %p65, %p66
      %p68 = scmp.ne.s32.totalorder %s60, %s62
      %p69 = scmp.eq.s32.totalorder %s17, 1
      %p70 = por %p68, %p69
      %p71 = scmp.ne.s32.totalorder %s62, %s63
      %p72 = scmp.eq.s32.totalorder %s17, 0
      %p73 = por %p71, %p72
      %p74 = scmp.ne.s32.totalorder %s62, %s63
      %p75 = scmp.eq.s32.totalorder %s18, 1
      %p76 = por %p74, %p75
      %p78 = scmp.ne.s32.totalorder %s63, %s77
      %p79 = scmp.eq.s32.totalorder %s18, 0
      %p80 = por %p78, %p79
      %s82 = sadd.s32 %s81, 1
      %p85 = scmp.eq.s32.totalorder %s12, 1
      %p86 = scmp.ne.s32.totalorder %s81, %s83
      %p87 = scmp.eq.s32.totalorder %s12, 0
      %p88 = por %p86, %p87
      %p89 = scmp.ne.s32.totalorder %s81, %s83
      %p90 = scmp.eq.s32.totalorder %s17, 1
      %p91 = por %p89, %p90
      %p92 = scmp.ne.s32.totalorder %s83, %s84
      %p93 = scmp.eq.s32.totalorder %s17, 0
      %p94 = por %p92, %p93
      %p95 = scmp.ne.s32.totalorder %s83, %s84
      %p96 = scmp.eq.s32.totalorder %s18, 1
      %p97 = por %p95, %p96
      %p99 = scmp.ne.s32.totalorder %s84, %s98
      %p100 = scmp.eq.s32.totalorder %s18, 0
      %p101 = por %p99, %p100
      %s102 = ssub.s32 %s19, %s31
      %p103 = scmp.eq.s32.totalorder %s102, 0
      %s105 = sadd.s32 %s104, 1
      %s106 = scalar_select %p103, %s104, %s105
      %p109 = pneg %p103
      %p110 = scmp.eq.s32.totalorder %s12, 1
      %p111 = por %p109, %p110
      %p112 = scmp.ne.s32.totalorder %s104, %s107
      %p113 = scmp.eq.s32.totalorder %s12, 0
      %p114 = por %p112, %p113
      %p115 = scmp.ne.s32.totalorder %s104, %s107
      %p116 = scmp.eq.s32.totalorder %s17, 1
      %p117 = por %p115, %p116
      %p118 = scmp.ne.s32.totalorder %s107, %s108
      %p119 = scmp.eq.s32.totalorder %s17, 0
      %p120 = por %p118, %p119
      %p121 = scmp.ne.s32.totalorder %s107, %s108
      %p122 = scmp.eq.s32.totalorder %s18, 1
      %p123 = por %p121, %p122
      %p125 = scmp.ne.s32.totalorder %s108, %s124
      %p126 = scmp.eq.s32.totalorder %s18, 0
      %p127 = por %p125, %p126
      %p128 = scmp.le.s32.totalorder 1, %s12
      %p129 = scmp.lt.s32.totalorder %s12, 3
      %p130 = pnand %p128, %p129
      %p131 = pneg %p130
      // Predicated region
      $region9: #{tpu_custom_call.1} parent=5 // pred_check
        _
      $region10: #{tpu_custom_call.1} parent=5 // pred_check_branch
        %133 = sbr.rel (%p130) target = $region12
      $region11: #{tpu_custom_call.1} parent=5 // pred_region
        %s134 = ssub.s32 %s12, 1
        // Predicated region
        $region13: #{tpu_custom_call.1} parent=11 // pred_check
          %p135 = pneg %p73
        $region14: #{tpu_custom_call.1} parent=11 // pred_check_branch
          %137 = sbr.rel (%p135) target = $region16
        $region15: #{tpu_custom_call.1} parent=11 // pred_region
          _
        $region16: #{tpu_custom_call.1} parent=11 // pred_fallthru
          _
        // Predicated region
        $region17: #{tpu_custom_call.1} parent=11 // pred_check
          %p138 = pneg %p94
        $region18: #{tpu_custom_call.1} parent=11 // pred_check_branch
          %140 = sbr.rel (%p138) target = $region20
        $region19: #{tpu_custom_call.1} parent=11 // pred_region
          _
        $region20: #{tpu_custom_call.1} parent=11 // pred_fallthru
          _
      $region12: #{tpu_custom_call.1} parent=5 // pred_fallthru
        _
      %p141 = scmp.lt.s32.totalorder %s12, 2
      // Predicated region
      $region21: #{tpu_custom_call.1} parent=5 // pred_check
        %p142 = pneg %p141
      $region22: #{tpu_custom_call.1} parent=5 // pred_check_branch
        %144 = sbr.rel (%p142) target = $region24
      $region23: #{tpu_custom_call.1} parent=5 // pred_region
        // Predicated region
        $region25: #{tpu_custom_call.1} parent=23 // pred_check
          %p145 = pneg %p46
        $region26: #{tpu_custom_call.1} parent=23 // pred_check_branch
          %147 = sbr.rel (%p145) target = $region28
        $region27: #{tpu_custom_call.1} parent=23 // pred_region
          %p148 = scmp.lt.s32.totalorder %s19, 1
          %s149 = scalar_select %p148, %s19, 1
          %p150 = scmp.lt.s32.totalorder %s20, 0
          %s151 = scalar_select %p150, %s20, 0
          %s152 = smul.addr %s149, 4
          %s153 = sadd.s32 %s151, %s152
          %s154 = smul.addr %s153, 8
          %s155 = scalar_lea.vmem %s0, %s154
        $region28: #{tpu_custom_call.1} parent=23 // pred_fallthru
          _
      $region24: #{tpu_custom_call.1} parent=5 // pred_fallthru
        _
      %p156 = scmp.le.s32.totalorder 1, %s12
      %p157 = scmp.lt.s32.totalorder %s12, 3
      %p158 = pnand %p156, %p157
      %p159 = pneg %p158
      // Predicated region
      $region29: #{tpu_custom_call.1} parent=5 // pred_check
        _
      $region30: #{tpu_custom_call.1} parent=5 // pred_check_branch
        %161 = sbr.rel (%p158) target = $region32
      $region31: #{tpu_custom_call.1} parent=5 // pred_region
        %s162 = ssub.s32 %s12, 1
        %p163 = scmp.lt.s32.totalorder %s21, 1
        %s164 = scalar_select %p163, %s21, 1
        %p165 = scmp.lt.s32.totalorder %s22, 0
        %s166 = scalar_select %p165, %s22, 0
        %s167 = smul.addr %s164, 4
        %s168 = sadd.s32 %s166, %s167
        %s169 = smul.addr %s168, 8
        %s170 = scalar_lea.vmem %s0, %s169
        %p171 = pneg %p52
        %p172 = pneg %p49
        %p173 = pneg %p73
        %p174 = pneg %p70
        %p175 = pneg %p94
        %p176 = pneg %p91
        %p177 = pneg %p120
        %p178 = pneg %p117
        %s179 = sand.u32 %s107, 1
        %s180 = scalar_lea.sflag [#allocation4], %s179
        %s181 = sand.u32 %s107, 1
        %s182 = scalar_lea.vmem [#allocation3], %s181
        %p183 = scmp.lt.s32.totalorder %s21, 1
        %s184 = scalar_select %p183, %s21, 1
        %p185 = scmp.lt.s32.totalorder %s22, 0
        %s186 = scalar_select %p185, %s22, 0
        %s187 = smul.addr %s184, 4
        %s188 = sadd.s32 %s186, %s187
        %s189 = smul.addr %s188, 8
        %s190 = scalar_lea.vmem %s0, %s189
        %p191 = scmp.eq.s32.totalorder %s22, 0
        // Predicated region
        $region33: #{tpu_custom_call.1} parent=31 // pred_check
          %p192 = pneg %p191
        $region34: #{tpu_custom_call.1} parent=31 // pred_check_branch
          %194 = sbr.rel (%p192) target = $region36
        $region35: #{tpu_custom_call.1} parent=31 // pred_region
          %vm195 = vcmask 64512
          %196 = vst.msk [vmem:[#allocation2] sm:$0xff] %vm195, 0.0
          %197 = vst.msk [vmem:[#allocation2 + $0x8] sm:$0xff] %vm195, 0.0
          %198 = vst.msk [vmem:[#allocation2 + $0x10] sm:$0xff] %vm195, 0.0
          %199 = vst.msk [vmem:[#allocation2 + $0x18] sm:$0xff] %vm195, 0.0
        $region36: #{tpu_custom_call.1} parent=31 // pred_fallthru
          _
        %v200 = vld [vmem:[%s190] sm:$0xff]
        %v201 = vld [vmem:[%s190 + $0x8] sm:$0xff]
        %v202 = vld [vmem:[%s190 + $0x10] sm:$0xff]
        %v203 = vld [vmem:[%s190 + $0x18] sm:$0xff]
        %v204 = vld [vmem:[#allocation2] sm:$0xff]
        %v205 = vld [vmem:[#allocation2 + $0x8] sm:$0xff]
        %v206 = vld [vmem:[#allocation2 + $0x10] sm:$0xff]
        %v207 = vld [vmem:[#allocation2 + $0x18] sm:$0xff]
        %v208 = vadd.f32 %v204, %v200
        %v209 = vadd.f32 %v205, %v201
        %v210 = vadd.f32 %v206, %v202
        %v211 = vadd.f32 %v207, %v203
        %vm212 = vcmask 64512
        %213 = vst.msk [vmem:[#allocation2] sm:$0xff] %vm212, %v208
        %214 = vst.msk [vmem:[#allocation2 + $0x8] sm:$0xff] %vm212, %v209
        %215 = vst.msk [vmem:[#allocation2 + $0x10] sm:$0xff] %vm212, %v210
        %216 = vst.msk [vmem:[#allocation2 + $0x18] sm:$0xff] %vm212, %v211
        // Predicated region
        $region37: #{tpu_custom_call.1} parent=31 // pred_check
          %p217 = pneg %p191
        $region38: #{tpu_custom_call.1} parent=31 // pred_check_branch
          %219 = sbr.rel (%p217) target = $region40
        $region39: #{tpu_custom_call.1} parent=31 // pred_region
          %v220 = vld [vmem:[#allocation2] sm:$0xff]
          %v221 = vld [vmem:[#allocation2 + $0x8] sm:$0xff]
          %v222 = vld [vmem:[#allocation2 + $0x10] sm:$0xff]
          %v223 = vld [vmem:[#allocation2 + $0x18] sm:$0xff]
          %v224 = vsel %vm212, %v220, 0.0
          %225 = vadd.xlane.f32.xlu0 %v224
          %v226 = vpop.xlane.xlu0 %225
          %v227 = vsel %vm212, %v221, 0.0
          %228 = vadd.xlane.f32.xlu0 %v227
          %v229 = vpop.xlane.xlu0 %228
          %v230 = vsel %vm212, %v222, 0.0
          %231 = vadd.xlane.f32.xlu0 %v230
          %v232 = vpop.xlane.xlu0 %231
          %v233 = vsel %vm212, %v223, 0.0
          %234 = vadd.xlane.f32.xlu0 %v233
          %v235 = vpop.xlane.xlu0 %234
          %v236 = vmul.f32 %v226, 0.125
          %v237 = vmul.f32 %v229, 0.125
          %v238 = vmul.f32 %v232, 0.125
          %v239 = vmul.f32 %v235, 0.125
          %v240 = vld [vmem:[%s1] sm:$0xff]
          %v241 = vld [vmem:[%s1 + $0x8] sm:$0xff]
          %v242 = vld [vmem:[%s1 + $0x10] sm:$0xff]
          %v243 = vld [vmem:[%s1 + $0x18] sm:$0xff]
          %v244 = vld [vmem:[%s2] sm:$0x1]
          %v249 = vlaneseq
          %v250 = vand.u32 %v249, 127
          %v251 = vperm.slane %v236, %v250
          %v252 = vadd.s32 %v250, 4294967288
          %v253 = vperm.slane %v237, %v252
          %vm254 = vcmask 130112
          %v255 = vsel %vm254, %v253, %v251
          %v256 = vadd.s32 %v250, 4294967280
          %v257 = vperm.slane %v238, %v256
          %vm258 = vcmask 195712
          %v259 = vsel %vm258, %v257, %v255
          %v260 = vadd.s32 %v250, 4294967272
          %v261 = vperm.slane %v239, %v260
          %vm262 = vcmask 261312
          %v263 = vsel %vm262, %v261, %v259
          %vm264 = vcmask 261120
          %v265 = vsel %vm264, %v263, 0
          %267 = vmatpush.msra.mxu0 0.0
          %268 = vmatpush.msra.mxu0 0.0
          %269 = vmatpush.msra.mxu0 0.0
          %270 = vmatpush.msra.mxu0 0.0
          %271 = vmatpush.msra.mxu0 0.0
          %272 = vmatpush.msra.mxu0 0.0
          %273 = vmatpush.msra.mxu0 0.0
          %274 = vmatpush.msra.mxu0 0.0
          %275 = vmatpush.msra.mxu0 0.0
          %276 = vmatpush.msra.mxu0 0.0
          %277 = vmatpush.msra.mxu0 0.0
          %278 = vmatpush.msra.mxu0 0.0
          %279 = vmatpush.msra.mxu0 %v243
          %280 = vmatpush.msra.mxu0 %v242
          %281 = vmatpush.msra.mxu0 %v241
          %282 = vmatpush.msra.mxu0 %v240
          %283 = vmatmul.f32.gmra.mxu0 %v265
          %v284 = vpop.f32.mrf.mxu0
          %v285 = vadd.f32 %v244, %v284
          %286 = vdwg.mxu0
          %vm287 = vcmask 1040384
          %v288 = vsel %vm287, %v285, -inf
          %289 = vmax.xlane.f32.xlu0 %v288
          %v290 = vpop.xlane.xlu0 %289
          %v291 = vsub.f32 %v285, %v290
          %v292 = vmul.f32 %v291, 1.442695
          %v293 = vpow.pop %v292
          %v294 = vsel %vm287, %v293, 0.0
          %295 = vadd.xlane.f32.xlu0 %v294
          %v296 = vpop.xlane.xlu0 %295
          %v297 = vlog2.pop %v296
          %v298 = vmul.f32 %v297, 0.6931472
          %v299 = vsub.f32 %v291, %v298
          %300 = vst [vmem:[%s182] sm:$0x1] %v299
        $region40: #{tpu_custom_call.1} parent=31 // pred_fallthru
          _
        %s301 = sand.u32 %s107, 1
        %s302 = scalar_lea.sflag [#allocation4], %s301
        %s303 = sand.u32 %s107, 1
        %s304 = scalar_lea.vmem [#allocation3], %s303
        // Predicated region
        $region41: #{tpu_custom_call.1} parent=31 // pred_check
          %p305 = pneg %p117
        $region42: #{tpu_custom_call.1} parent=31 // pred_check_branch
          %307 = sbr.rel (%p305) target = $region44
        $region43: #{tpu_custom_call.1} parent=31 // pred_region
          %309 = vsyncadd %s302, 0
          %s310 = scalar_lea.hbm %s3, %s21
          %s312 = sshll.u32 %s304, 4
          %s313 = int_to_ptr.vmem [resolvable:$true] %s312
          %s314 = sshll.u32 %s310, 4
          %s315 = int_to_ptr.hbm [resolvable:$true] %s314
          %317 = dma.vmem_to_hbm [thread:$0]  %s313, 16, %s315, %s302
        $region44: #{tpu_custom_call.1} parent=31 // pred_fallthru
          _
      $region32: #{tpu_custom_call.1} parent=5 // pred_fallthru
        _
      %p318 = scmp.le.s32.totalorder 2, %s12
      // Predicated region
      $region45: #{tpu_custom_call.1} parent=5 // pred_check
        %p319 = pneg %p318
      $region46: #{tpu_custom_call.1} parent=5 // pred_check_branch
        %321 = sbr.rel (%p319) target = $region48
      $region47: #{tpu_custom_call.1} parent=5 // pred_region
        %s322 = ssub.s32 %s12, 2
        // Predicated region
        $region49: #{tpu_custom_call.1} parent=47 // pred_check
          %p323 = pneg %p123
        $region50: #{tpu_custom_call.1} parent=47 // pred_check_branch
          %325 = sbr.rel (%p323) target = $region52
        $region51: #{tpu_custom_call.1} parent=47 // pred_region
          %s326 = sand.u32 %s108, 1
          %s327 = scalar_lea.sflag [#allocation4], %s326
          %s328 = sand.u32 %s108, 1
          %s329 = scalar_lea.vmem [#allocation3], %s328
          %331 = dma.done %s327, 16
        $region52: #{tpu_custom_call.1} parent=47 // pred_fallthru
          _
      $region48: #{tpu_custom_call.1} parent=5 // pred_fallthru
        _
    $region6: #{tpu_custom_call.1} parent=1 // loop_footer
      %s16 = sadd.s32 1, %s12
    $region7: #{tpu_custom_call.1} parent=1 // loop_footer_branch
      %11 = sbr.rel target = $region3
    $region8: #{tpu_custom_call.1} parent=1 // loop_exit
      _
    %332 = vsyncpa [#allocation4], 1
    %s333 = scalar_lea.sflag [#allocation4], 1
    %334 = vsyncpa %s333, 1

</llo_original>
